<compile_context>
chip_gen: v6e
topology: v6e:2x2x1
jax: 0.10.0
libtpu: 0.0.40
codegen_flags: <defaults>
</compile_context>

<pallas_src>
import jax
import jax.numpy as jnp
import numpy as np
from jax.experimental import pallas as pl
from jax.experimental.pallas import tpu as pltpu


def _attentive_pooling_kernel(x_ref, sel_ref, ws_ref, wm_ref, shift_ref, o_ref):
    # x_ref:     (C_in, TN*K)   one (batch, N-tile) block, channels on sublanes,
    #                           (n, k) flattened on the lane axis (k fastest)
    # sel_ref:   (TN*K, TN)     0/1 block selector: column n sums lanes n*K..n*K+K-1
    # ws_ref:    (C_in, C_in)   score Linear weight (out, in), used as-is
    # wm_ref:    (C_out, C_in)  1x1-conv weight with eval-BatchNorm scale folded in
    # shift_ref: (C_out, 1)     conv_bias * bn_scale + bn_shift
    # o_ref:     (C_out, TN)    lane-dense output block of the (B, C_out, N) result
    x_raw = x_ref[...]                                    # input dtype (f32 or bf16)
    x32 = x_raw.astype(jnp.float32)                       # VPU/EUP path stays f32

    # Attention scores, channels-first on the MXU: no transpose of the big tile;
    # bf16 inputs feed the MXU directly (f32 accumulate).
    s = jnp.dot(ws_ref[...].astype(x_raw.dtype), x_raw,
                preferred_element_type=jnp.float32)       # (C_in, M)

    # Per-channel-row max is an exact softmax shift (every K-group shares it), so
    # no per-group segmented max / relayout is needed; exp is fully lane-dense.
    m_row = jnp.max(s, axis=1, keepdims=True)             # (C_in, 1)
    p = jnp.exp(s - m_row)                                # (C_in, M)
    pz = p * x32                                          # (C_in, M)

    # Softmax-over-K pooling: K-group sums via block-selector matmuls (MXU), which
    # avoids XLU transposes and strided lane ops entirely; works for any K.
    sel = sel_ref[...]                                    # (M, TN) 0/1
    denom = jnp.dot(p, sel, preferred_element_type=jnp.float32)    # (C_in, TN)
    num = jnp.dot(pz, sel, preferred_element_type=jnp.float32)     # (C_in, TN)
    feat = num * pl.reciprocal(jnp.maximum(denom, 1e-30), approx=True)

    # SharedMLP: fused (1x1 conv * BN-scale) matmul + shift + ReLU, channels-first
    # on both operands (no feat.T); TN stays lane-dense through the store.
    y = jnp.dot(wm_ref[...], feat, preferred_element_type=jnp.float32)  # (C_out, TN)
    y = y + shift_ref[...]
    o_ref[...] = jnp.maximum(y, 0.0).astype(o_ref.dtype)


def _vmem_limit_bytes():
    """~3/4 of physical VMEM, capped at 96 MiB (v7x 64 MiB -> 48 MiB; v5e/v6e -> 96)."""
    cap = 64 * 1024 * 1024
    try:
        cap = int(pltpu.get_tpu_info().vmem_capacity_bytes)
    except Exception:
        pass
    return int(min(96 * 1024 * 1024, (cap * 3) // 4))


def _choose_tiling(B, N, K, C_in, C_out, x_itemsize, vmem_limit, tile_n=None):
    """Pick (tile_n, padded_N). tile_n is a multiple of 128 whenever N is tiled;
    small N uses one whole-N tile per batch (no padding -> no HBM pad copy)."""

    def footprint(tn):
        m = tn * K
        return (2 * C_in * m * x_itemsize          # x block (double-buffered)
                + 2 * m * tn * 4                   # selector (double-buffered)
                + 6 * C_in * m * 4                 # in-kernel f32 temporaries
                + 2 * C_out * tn * 4               # output block (double-buffered)
                + 4 * (C_in * C_in + C_out * (C_in + 1)))

    if tile_n is not None:
        n_pad = -(-N // tile_n) * tile_n
        if n_pad != tile_n and tile_n % 128 != 0:
            raise ValueError("tile_n must be a multiple of 128 when N is tiled")
        return tile_n, n_pad

    budget = int(vmem_limit * 0.6)
    # Small N: one whole-N tile per batch; B >= 2 keeps >= 2 parallel grid units
    # for 2-TensorCore chips (v7x).
    if N <= 384 and B >= 2 and footprint(N) <= budget:
        return N, N

    n_pad = -(-N // 128) * 128
    tile = 128                                   # always divides n_pad and fits
    for cand in (512, 384, 256):                 # larger tiles amortize ~0.35us/step,
        if (n_pad % cand == 0                    # but bound the selector matmul and
                and footprint(cand) <= budget    # the f32 temporaries in VMEM
                and B * (n_pad // cand) >= 2):
            tile = cand
            break
    return tile, n_pad


def attentive_pooling(x_nchw, params, *, tile_n=None):
    """x_nchw: (B, C_in, N, K) f32 or bf16  ->  (B, C_out, N, 1) float32."""
    B, C_in, N, K = x_nchw.shape
    C_out = params["conv_w"].shape[0]
    eps = 1e-6  # BatchNorm2d(..., eps=1e-06), eval mode (running stats)

    # Score Linear weight used as-is (channels-first kernel needs no transpose).
    ws = params["score_w"].astype(jnp.float32)                         # (C_in, C_in)

    # Fold conv bias + eval-mode BatchNorm into one fused weight and one shift vector.
    w_conv = params["conv_w"].reshape(C_out, C_in).astype(jnp.float32)
    bn_scale = params["bn_gamma"] / jnp.sqrt(params["bn_rvar"] + eps)
    wm_fused = (w_conv * bn_scale[:, None]).astype(jnp.float32)        # (C_out, C_in)
    shift_fused = (params["conv_b"] * bn_scale + params["bn_beta"]
                   - params["bn_rmean"] * bn_scale).reshape(C_out, 1).astype(jnp.float32)

    vmem_limit = _vmem_limit_bytes()
    tile_n, n_pad = _choose_tiling(B, N, K, C_in, C_out,
                                   jnp.dtype(x_nchw.dtype).itemsize, vmem_limit,
                                   tile_n=tile_n)
    n_tiles = n_pad // tile_n

    x_in = x_nchw
    if n_pad != N:
        x_in = jnp.pad(x_nchw, ((0, 0), (0, 0), (0, n_pad - N), (0, 0)))
    # Free (layout-preserving) reshape: (B, C_in, N, K) -> (B, C_in, N*K).
    x_flat = x_in.reshape(B, C_in, n_pad * K)

    # 0/1 block selector for the K-group sums; works for any K (no power-of-2 /
    # multiple-of-8 requirement).  Resident in VMEM across the whole grid.
    grp = np.arange(tile_n * K) // K
    sel = jnp.asarray((grp[:, None] == np.arange(tile_n)[None, :]).astype(np.float32))

    out = pl.pallas_call(
        _attentive_pooling_kernel,
        out_shape=jax.ShapeDtypeStruct((B, C_out, n_pad), jnp.float32),
        grid=(B, n_tiles),
        in_specs=[
            pl.BlockSpec((None, C_in, tile_n * K), lambda b, n: (b, 0, n)),
            pl.BlockSpec((tile_n * K, tile_n), lambda b, n: (0, 0)),   # resident
            pl.BlockSpec((C_in, C_in), lambda b, n: (0, 0)),           # resident
            pl.BlockSpec((C_out, C_in), lambda b, n: (0, 0)),
            pl.BlockSpec((C_out, 1), lambda b, n: (0, 0)),
        ],
        out_specs=pl.BlockSpec((None, C_out, tile_n), lambda b, n: (b, 0, n)),
        compiler_params=pltpu.CompilerParams(
            dimension_semantics=("parallel", "parallel"),
            vmem_limit_bytes=vmem_limit),
    )(x_flat, sel, ws, wm_fused, shift_fused)

    out = out[:, :, :N]
    # Already in the PyTorch layout: (B, C_out, N, 1); no transpose needed.
    return out[..., None]


def attentive_pooling_ref(x_nchw, params):
    """Pure-JAX reference mirroring the PyTorch forward (BN in eval mode)."""
    eps = 1e-6
    hi = jax.lax.Precision.HIGHEST
    x32 = x_nchw.astype(jnp.float32)
    xp = jnp.transpose(x32, (0, 2, 3, 1))                             # (B,N,K,C)
    s = jnp.einsum("bnkc,oc->bnko", xp, params["score_w"], precision=hi)
    scores = jax.nn.softmax(s, axis=-2)                               # softmax over K
    scores = jnp.transpose(scores, (0, 3, 1, 2))                      # (B,C,N,K)
    feat = jnp.sum(scores * x32, axis=-1)                             # (B,C,N)
    w = params["conv_w"].reshape(params["conv_w"].shape[0], -1)       # (Cout,Cin)
    y = jnp.einsum("bcn,oc->bon", feat, w, precision=hi) + params["conv_b"][None, :, None]
    y = ((y - params["bn_rmean"][None, :, None]) /
         jnp.sqrt(params["bn_rvar"] + eps)[None, :, None] *
         params["bn_gamma"][None, :, None] + params["bn_beta"][None, :, None])
    return jnp.maximum(y, 0.0)[..., None]                             # (B,Cout,N,1)


def make_params(key, c_in, c_out):
    k = jax.random.split(key, 5)
    return {
        # nn.Linear(c_in, c_in, bias=False): weight (out, in)
        "score_w": jax.random.normal(k[0], (c_in, c_in), jnp.float32) * 0.2,
        # nn.Conv2d(c_in, c_out, 1): weight (out, in, 1, 1), bias (out,)
        "conv_w": jax.random.normal(k[1], (c_out, c_in, 1, 1), jnp.float32) * 0.2,
        "conv_b": jax.random.normal(k[2], (c_out,), jnp.float32) * 0.1,
        # BatchNorm2d(c_out, eps=1e-6, momentum=0.99) affine + running stats (eval)
        "bn_gamma": 1.0 + 0.1 * jax.random.normal(k[3], (c_out,), jnp.float32),
        "bn_beta": 0.1 * jax.random.normal(k[4], (c_out,), jnp.float32),
        "bn_rmean": 0.05 * jnp.ones((c_out,), jnp.float32),
        "bn_rvar": jnp.ones((c_out,), jnp.float32),
    }


if __name__ == "__main__":
    key = jax.random.PRNGKey(0)

    # Case 1: small single-tile case (shrunk AttentivePooling(16 -> 32) stage).
    B, C_in, N, K, C_out = 2, 16, 64, 8, 32
    kx, kp, key = jax.random.split(key, 3)
    x = jax.random.normal(kx, (B, C_in, N, K), jnp.float32)
    params = make_params(kp, C_in, C_out)
    out = jax.block_until_ready(attentive_pooling(x, params))
    ref = jax.block_until_ready(attentive_pooling_ref(x, params))
    assert out.shape == (B, C_out, N, 1), out.shape
    np.testing.assert_allclose(np.asarray(out), np.asarray(ref), rtol=3e-3, atol=3e-3)

    # Case 2: forced N tiling (grid=(B, 2)); ragged N padded only to the next 128.
    B2, C2_in, N2, K2, C2_out = 2, 16, 200, 16, 16
    kx, kp, key = jax.random.split(key, 3)
    x2 = jax.random.normal(kx, (B2, C2_in, N2, K2), jnp.float32)
    params2 = make_params(kp, C2_in, C2_out)
    ref2 = jax.block_until_ready(attentive_pooling_ref(x2, params2))
    out2 = jax.block_until_ready(attentive_pooling(x2, params2, tile_n=128))
    np.testing.assert_allclose(np.asarray(out2), np.asarray(ref2), rtol=3e-3, atol=3e-3)

    # Case 2b: default tiling picks one whole-N tile per batch (no HBM pad copy).
    out2b = jax.block_until_ready(attentive_pooling(x2, params2))
    np.testing.assert_allclose(np.asarray(out2b), np.asarray(ref2), rtol=3e-3, atol=3e-3)

    # Case 3: K=3, the module's default num_neighbors (no power-of-2 / mult-of-8
    # requirement on K), ragged N, small C_out.
    B3, C3_in, N3, K3, C3_out = 2, 16, 130, 3, 8
    kx, kp, key = jax.random.split(key, 3)
    x3 = jax.random.normal(kx, (B3, C3_in, N3, K3), jnp.float32)
    params3 = make_params(kp, C3_in, C3_out)
    out3 = jax.block_until_ready(attentive_pooling(x3, params3))
    ref3 = jax.block_until_ready(attentive_pooling_ref(x3, params3))
    np.testing.assert_allclose(np.asarray(out3), np.asarray(ref3), rtol=3e-3, atol=3e-3)

    # Case 4: bf16 activations feed the MXU directly (no pre-upcast before the dot).
    out4 = jax.block_until_ready(attentive_pooling(x2.astype(jnp.bfloat16), params2))
    np.testing.assert_allclose(np.asarray(out4), np.asarray(ref2), rtol=5e-2, atol=5e-2)

    print("KERNEL_OK")
</pallas_src>

<mosaic_0001>
module attributes {stable_mosaic.version = 11 : i64} {
  func.func @_attentive_pooling_kernel(%arg0: i32, %arg1: i32, %arg2: memref<1x16x512xf32, #tpu.memory_space<vmem>>, %arg3: memref<512x64xf32, #tpu.memory_space<vmem>>, %arg4: memref<16x16xf32, #tpu.memory_space<vmem>>, %arg5: memref<32x16xf32, #tpu.memory_space<vmem>>, %arg6: memref<32x1xf32, #tpu.memory_space<vmem>>, %arg7: memref<1x32x64xf32, #tpu.memory_space<vmem>>) attributes {dimension_semantics = [#tpu.dimension_semantics<parallel>, #tpu.dimension_semantics<parallel>], iteration_bounds = array<i64: 2, 1>, scalar_prefetch = 0 : i64, scratch_operands = 0 : i64, tpu.core_type = #tpu.core_type<tc>, window_params = [{transform_indices = @transform_0, window_bounds = array<i64: 1, 16, 512>}, {pipeline_mode = #tpu.pipeline_mode<synchronous>, transform_indices = @transform_1, window_bounds = array<i64: 512, 64>}, {pipeline_mode = #tpu.pipeline_mode<synchronous>, transform_indices = @transform_2, window_bounds = array<i64: 16, 16>}, {pipeline_mode = #tpu.pipeline_mode<synchronous>, transform_indices = @transform_3, window_bounds = array<i64: 32, 16>}, {pipeline_mode = #tpu.pipeline_mode<synchronous>, transform_indices = @transform_4, window_bounds = array<i64: 32, 1>}, {transform_indices = @transform_5, window_bounds = array<i64: 1, 32, 64>}]} {
    %c0 = arith.constant 0 : index
    %c0_0 = arith.constant 0 : index
    %c0_1 = arith.constant 0 : index
    %0 = vector.load %arg2[%c0, %c0_0, %c0_1] : memref<1x16x512xf32, #tpu.memory_space<vmem>>, vector<1x16x512xf32>
    %1 = vector.shape_cast %0 : vector<1x16x512xf32> to vector<16x512xf32>
    %c0_2 = arith.constant 0 : index
    %c0_3 = arith.constant 0 : index
    %2 = vector.load %arg4[%c0_2, %c0_3] : memref<16x16xf32, #tpu.memory_space<vmem>>, vector<16x16xf32>
    %cst = arith.constant dense<0.000000e+00> : vector<16x512xf32>
    %3 = tpu.matmul %2, %1, %cst {dimension_numbers = #tpu.dot_dimension_numbers<[1], [0], [0], [1], [0, 0, 1, 1], [], []>} : vector<16x16xf32>, vector<16x512xf32>, vector<16x512xf32> -> vector<16x512xf32>
    %cst_4 = arith.constant dense<0xFF800000> : vector<16xf32>
    %4 = vector.multi_reduction <maximumf>, %3, %cst_4 [1] : vector<16x512xf32> to vector<16xf32>
    %5 = vector.shape_cast %4 : vector<16xf32> to vector<16x1xf32>
    %6 = vector.broadcast %5 : vector<16x1xf32> to vector<16x512xf32>
    %7 = arith.subf %3, %6 : vector<16x512xf32>
    %8 = math.exp %7 : vector<16x512xf32>
    %9 = arith.mulf %8, %1 : vector<16x512xf32>
    %c0_5 = arith.constant 0 : index
    %c0_6 = arith.constant 0 : index
    %10 = vector.load %arg3[%c0_5, %c0_6] : memref<512x64xf32, #tpu.memory_space<vmem>>, vector<512x64xf32>
    %cst_7 = arith.constant dense<0.000000e+00> : vector<16x64xf32>
    %11 = tpu.matmul %8, %10, %cst_7 {dimension_numbers = #tpu.dot_dimension_numbers<[1], [0], [0], [1], [0, 0, 1, 1], [], []>} : vector<16x512xf32>, vector<512x64xf32>, vector<16x64xf32> -> vector<16x64xf32>
    %cst_8 = arith.constant dense<0.000000e+00> : vector<16x64xf32>
    %12 = tpu.matmul %9, %10, %cst_8 {dimension_numbers = #tpu.dot_dimension_numbers<[1], [0], [0], [1], [0, 0, 1, 1], [], []>} : vector<16x512xf32>, vector<512x64xf32>, vector<16x64xf32> -> vector<16x64xf32>
    %cst_9 = arith.constant 1.000000e-30 : f32
    %13 = vector.broadcast %cst_9 : f32 to vector<16x64xf32>
    %14 = arith.maximumf %11, %13 : vector<16x64xf32>
    %15 = tpu.reciprocal %14 {approx = true} : vector<16x64xf32> -> vector<16x64xf32>
    %16 = arith.mulf %12, %15 : vector<16x64xf32>
    %c0_10 = arith.constant 0 : index
    %c0_11 = arith.constant 0 : index
    %17 = vector.load %arg5[%c0_10, %c0_11] : memref<32x16xf32, #tpu.memory_space<vmem>>, vector<32x16xf32>
    %cst_12 = arith.constant dense<0.000000e+00> : vector<32x64xf32>
    %18 = tpu.matmul %17, %16, %cst_12 {dimension_numbers = #tpu.dot_dimension_numbers<[1], [0], [0], [1], [0, 0, 1, 1], [], []>} : vector<32x16xf32>, vector<16x64xf32>, vector<32x64xf32> -> vector<32x64xf32>
    %c0_13 = arith.constant 0 : index
    %c0_14 = arith.constant 0 : index
    %19 = vector.load %arg6[%c0_13, %c0_14] : memref<32x1xf32, #tpu.memory_space<vmem>>, vector<32x1xf32>
    %20 = vector.broadcast %19 : vector<32x1xf32> to vector<32x64xf32>
    %21 = arith.addf %18, %20 : vector<32x64xf32>
    %cst_15 = arith.constant 0.000000e+00 : f32
    %22 = vector.broadcast %cst_15 : f32 to vector<32x64xf32>
    %23 = arith.maximumf %21, %22 : vector<32x64xf32>
    %c0_16 = arith.constant 0 : index
    %c0_17 = arith.constant 0 : index
    %c0_18 = arith.constant 0 : index
    %24 = vector.load %arg7[%c0_16, %c0_17, %c0_18] : memref<1x32x64xf32, #tpu.memory_space<vmem>>, vector<1x32x64xf32>
    %25 = vector.shape_cast %24 : vector<1x32x64xf32> to vector<32x64xf32>
    %26 = vector.shape_cast %23 : vector<32x64xf32> to vector<1x32x64xf32>
    tpu.vector_store %arg7[%c0_16, %c0_17, %c0_18], %26 {strides = array<i32>} : memref<1x32x64xf32, #tpu.memory_space<vmem>>, vector<1x32x64xf32>,
    return
  }
  func.func @transform_0(%arg0: i32, %arg1: i32) -> (i32, i32, i32) {
    %c0_i32 = arith.constant 0 : i32
    %c0_i32_0 = arith.constant 0 : i32
    return %arg0, %c0_i32, %arg1 : i32, i32, i32
  }
  func.func @transform_1(%arg0: i32, %arg1: i32) -> (i32, i32) {
    %c0_i32 = arith.constant 0 : i32
    %c0_i32_0 = arith.constant 0 : i32
    %c0_i32_1 = arith.constant 0 : i32
    return %c0_i32, %c0_i32_0 : i32, i32
  }
  func.func @transform_2(%arg0: i32, %arg1: i32) -> (i32, i32) {
    %c0_i32 = arith.constant 0 : i32
    %c0_i32_0 = arith.constant 0 : i32
    %c0_i32_1 = arith.constant 0 : i32
    return %c0_i32, %c0_i32_0 : i32, i32
  }
  func.func @transform_3(%arg0: i32, %arg1: i32) -> (i32, i32) {
    %c0_i32 = arith.constant 0 : i32
    %c0_i32_0 = arith.constant 0 : i32
    %c0_i32_1 = arith.constant 0 : i32
    return %c0_i32, %c0_i32_0 : i32, i32
  }
  func.func @transform_4(%arg0: i32, %arg1: i32) -> (i32, i32) {
    %c0_i32 = arith.constant 0 : i32
    %c0_i32_0 = arith.constant 0 : i32
    %c0_i32_1 = arith.constant 0 : i32
    return %c0_i32, %c0_i32_0 : i32, i32
  }
  func.func @transform_5(%arg0: i32, %arg1: i32) -> (i32, i32, i32) {
    %c0_i32 = arith.constant 0 : i32
    %c0_i32_0 = arith.constant 0 : i32
    return %arg0, %c0_i32, %arg1 : i32, i32, i32
  }
}

</mosaic_0001>

<llo_original>
// kernel: tpu_custom_call.1
$region0: #{tpu_custom_call.1}
  #allocation0 [shape = 'u32[]', space=smem, size = 0x4, offset = 0x4, fixed_abs, tag = 'smem constant byte address 0x4 - core index']
  #allocation1 [shape = 'u32[144,128]{1,0:T(1,128)}', space=vmem, size = 0x12000, scoped, tag = 'internal scratch']
  %s0 = inlined_call_operand.vmem [shape: f32[2,16,512], index: 0, kind: input, shape index: {}]
  %s1 = inlined_call_operand.vmem [shape: f32[512,64], index: 1, kind: input, shape index: {}]
  %s2 = inlined_call_operand.vmem [shape: f32[16,16], index: 2, kind: input, shape index: {}]
  %s3 = inlined_call_operand.vmem [shape: f32[32,16], index: 3, kind: input, shape index: {}]
  %s4 = inlined_call_operand.vmem [shape: f32[32,1], index: 4, kind: input, shape index: {}]
  %s5 = inlined_call_operand.hbm [shape: f32[2,32,64], index: 5, kind: output, shape index: {}]
  %s6 = sld [smem:[#allocation0]]
  $region53: #{tpu_custom_call.1} parent=0
    _
  %s8 = ssub.s32 1, %s6
  %s9 = scalar_select 0, %s8, %s6
  $region1: #{tpu_custom_call.1} parent=0
    #allocation2 [shape = 'u8[32768]{0}', space=vmem, size = 0x8000, scoped, tag = 'output window, operand 0']
    #allocation3 [shape = 's32[2]{0}', space=sflag, size = 0x8, scoped, tag = 'scoped memory for tpu_custom_call.1']
    %10 = vsyncpa [#allocation3], 0
    %s11 = scalar_lea.sflag [#allocation3], 1
    %12 = vsyncpa %s11, 0
    loop: start=0, step=1, limit=4
    $region2: #{tpu_custom_call.1} parent=1 // loop_pre_header
      _
    $region3: #{tpu_custom_call.1} parent=1 // loop_header
      %s14 = sphi 0, %s18
      %p15 = scmp.ge.s32.totalorder %s14, 4
      %s21 = sphi 0, %s33
      %s22 = sphi 0, %s29
      %s23 = sphi 0, %s21
      %s24 = sphi 0, %s22
      %s25 = sphi 0, %s23
      %s26 = sphi 0, %s24
      %s38 = sphi 0, %s40
      %s41 = sphi 0, %s38
      %s42 = sphi 0, %s41
      %s58 = sphi 0, %s42
      %s62 = sphi 0, %s62
      %s64 = sphi 0, %s62
      %s65 = sphi 0, %s64
      %s79 = sphi 0, %s65
      %s83 = sphi 0, %s83
      %s85 = sphi 0, %s83
      %s86 = sphi 0, %s85
      %s100 = sphi 0, %s86
      %s104 = sphi 0, %s104
      %s106 = sphi 0, %s104
      %s107 = sphi 0, %s106
      %s121 = sphi 0, %s107
      %s125 = sphi 0, %s125
      %s127 = sphi 0, %s125
      %s128 = sphi 0, %s127
      %s142 = sphi 0, %s128
      %s150 = sphi 0, %s152
      %s153 = sphi 0, %s150
      %s154 = sphi 0, %s153
      %s170 = sphi 0, %s154
    $region4: #{tpu_custom_call.1} parent=1 // loop_header_branch
      %17 = sbr.rel (%p15) target = $region8
    $region5: #{tpu_custom_call.1} parent=1 // loop_body
      %s19 = ssub.s32 %s14, 1
      %s20 = ssub.s32 %s14, 2
      %s27 = sadd.s32 1, %s22
      %p28 = scmp.ge.s32.totalorder %s27, 1
      %s29 = scalar_select %p28, 0, %s27
      %s30 = sadd.s32 1, %s21
      %s31 = scalar_select %p28, %s30, %s21
      %p32 = scmp.ge.s32.totalorder %s31, 2
      %s33 = scalar_select %p32, 0, %s31
      %s34 = ssub.s32 %s21, %s33
      %s35 = ssub.s32 %s22, %s29
      %s36 = sor.u32 %s34, %s35
      %p37 = scmp.eq.s32.totalorder %s36, 0
      %s39 = sadd.s32 %s38, 1
      %s40 = scalar_select %p37, %s38, %s39
      %p43 = pneg %p37
      %p44 = scmp.eq.s32.totalorder %s14, 1
      %p45 = por %p43, %p44
      %p46 = scmp.ne.s32.totalorder %s38, %s41
      %p47 = scmp.eq.s32.totalorder %s14, 0
      %p48 = por %p46, %p47
      %p49 = scmp.ne.s32.totalorder %s38, %s41
      %p50 = scmp.eq.s32.totalorder %s19, 1
      %p51 = por %p49, %p50
      %p52 = scmp.ne.s32.totalorder %s41, %s42
      %p53 = scmp.eq.s32.totalorder %s19, 0
      %p54 = por %p52, %p53
      %p55 = scmp.ne.s32.totalorder %s41, %s42
      %p56 = scmp.eq.s32.totalorder %s20, 1
      %p57 = por %p55, %p56
      %p59 = scmp.ne.s32.totalorder %s42, %s58
      %p60 = scmp.eq.s32.totalorder %s20, 0
      %p61 = por %p59, %p60
      %s63 = sadd.s32 %s62, 1
      %p66 = scmp.eq.s32.totalorder %s14, 1
      %p67 = scmp.ne.s32.totalorder %s62, %s64
      %p68 = scmp.eq.s32.totalorder %s14, 0
      %p69 = por %p67, %p68
      %p70 = scmp.ne.s32.totalorder %s62, %s64
      %p71 = scmp.eq.s32.totalorder %s19, 1
      %p72 = por %p70, %p71
      %p73 = scmp.ne.s32.totalorder %s64, %s65
      %p74 = scmp.eq.s32.totalorder %s19, 0
      %p75 = por %p73, %p74
      %p76 = scmp.ne.s32.totalorder %s64, %s65
      %p77 = scmp.eq.s32.totalorder %s20, 1
      %p78 = por %p76, %p77
      %p80 = scmp.ne.s32.totalorder %s65, %s79
      %p81 = scmp.eq.s32.totalorder %s20, 0
      %p82 = por %p80, %p81
      %s84 = sadd.s32 %s83, 1
      %p87 = scmp.eq.s32.totalorder %s14, 1
      %p88 = scmp.ne.s32.totalorder %s83, %s85
      %p89 = scmp.eq.s32.totalorder %s14, 0
      %p90 = por %p88, %p89
      %p91 = scmp.ne.s32.totalorder %s83, %s85
      %p92 = scmp.eq.s32.totalorder %s19, 1
      %p93 = por %p91, %p92
      %p94 = scmp.ne.s32.totalorder %s85, %s86
      %p95 = scmp.eq.s32.totalorder %s19, 0
      %p96 = por %p94, %p95
      %p97 = scmp.ne.s32.totalorder %s85, %s86
      %p98 = scmp.eq.s32.totalorder %s20, 1
      %p99 = por %p97, %p98
      %p101 = scmp.ne.s32.totalorder %s86, %s100
      %p102 = scmp.eq.s32.totalorder %s20, 0
      %p103 = por %p101, %p102
      %s105 = sadd.s32 %s104, 1
      %p108 = scmp.eq.s32.totalorder %s14, 1
      %p109 = scmp.ne.s32.totalorder %s104, %s106
      %p110 = scmp.eq.s32.totalorder %s14, 0
      %p111 = por %p109, %p110
      %p112 = scmp.ne.s32.totalorder %s104, %s106
      %p113 = scmp.eq.s32.totalorder %s19, 1
      %p114 = por %p112, %p113
      %p115 = scmp.ne.s32.totalorder %s106, %s107
      %p116 = scmp.eq.s32.totalorder %s19, 0
      %p117 = por %p115, %p116
      %p118 = scmp.ne.s32.totalorder %s106, %s107
      %p119 = scmp.eq.s32.totalorder %s20, 1
      %p120 = por %p118, %p119
      %p122 = scmp.ne.s32.totalorder %s107, %s121
      %p123 = scmp.eq.s32.totalorder %s20, 0
      %p124 = por %p122, %p123
      %s126 = sadd.s32 %s125, 1
      %p129 = scmp.eq.s32.totalorder %s14, 1
      %p130 = scmp.ne.s32.totalorder %s125, %s127
      %p131 = scmp.eq.s32.totalorder %s14, 0
      %p132 = por %p130, %p131
      %p133 = scmp.ne.s32.totalorder %s125, %s127
      %p134 = scmp.eq.s32.totalorder %s19, 1
      %p135 = por %p133, %p134
      %p136 = scmp.ne.s32.totalorder %s127, %s128
      %p137 = scmp.eq.s32.totalorder %s19, 0
      %p138 = por %p136, %p137
      %p139 = scmp.ne.s32.totalorder %s127, %s128
      %p140 = scmp.eq.s32.totalorder %s20, 1
      %p141 = por %p139, %p140
      %p143 = scmp.ne.s32.totalorder %s128, %s142
      %p144 = scmp.eq.s32.totalorder %s20, 0
      %p145 = por %p143, %p144
      %s146 = ssub.s32 %s21, %s33
      %s147 = ssub.s32 %s22, %s29
      %s148 = sor.u32 %s146, %s147
      %p149 = scmp.eq.s32.totalorder %s148, 0
      %s151 = sadd.s32 %s150, 1
      %s152 = scalar_select %p149, %s150, %s151
      %p155 = pneg %p149
      %p156 = scmp.eq.s32.totalorder %s14, 1
      %p157 = por %p155, %p156
      %p158 = scmp.ne.s32.totalorder %s150, %s153
      %p159 = scmp.eq.s32.totalorder %s14, 0
      %p160 = por %p158, %p159
      %p161 = scmp.ne.s32.totalorder %s150, %s153
      %p162 = scmp.eq.s32.totalorder %s19, 1
      %p163 = por %p161, %p162
      %p164 = scmp.ne.s32.totalorder %s153, %s154
      %p165 = scmp.eq.s32.totalorder %s19, 0
      %p166 = por %p164, %p165
      %p167 = scmp.ne.s32.totalorder %s153, %s154
      %p168 = scmp.eq.s32.totalorder %s20, 1
      %p169 = por %p167, %p168
      %p171 = scmp.ne.s32.totalorder %s154, %s170
      %p172 = scmp.eq.s32.totalorder %s20, 0
      %p173 = por %p171, %p172
      %p174 = scmp.le.s32.totalorder 1, %s14
      %p175 = scmp.lt.s32.totalorder %s14, 3
      %p176 = pnand %p174, %p175
      %p177 = pneg %p176
      // Predicated region
      $region9: #{tpu_custom_call.1} parent=5 // pred_check
        _
      $region10: #{tpu_custom_call.1} parent=5 // pred_check_branch
        %179 = sbr.rel (%p176) target = $region12
      $region11: #{tpu_custom_call.1} parent=5 // pred_region
        %s180 = ssub.s32 %s14, 1
        // Predicated region
        $region13: #{tpu_custom_call.1} parent=11 // pred_check
          %p181 = pneg %p75
        $region14: #{tpu_custom_call.1} parent=11 // pred_check_branch
          %183 = sbr.rel (%p181) target = $region16
        $region15: #{tpu_custom_call.1} parent=11 // pred_region
          _
        $region16: #{tpu_custom_call.1} parent=11 // pred_fallthru
          _
        // Predicated region
        $region17: #{tpu_custom_call.1} parent=11 // pred_check
          %p184 = pneg %p96
        $region18: #{tpu_custom_call.1} parent=11 // pred_check_branch
          %186 = sbr.rel (%p184) target = $region20
        $region19: #{tpu_custom_call.1} parent=11 // pred_region
          _
        $region20: #{tpu_custom_call.1} parent=11 // pred_fallthru
          _
        // Predicated region
        $region21: #{tpu_custom_call.1} parent=11 // pred_check
          %p187 = pneg %p117
        $region22: #{tpu_custom_call.1} parent=11 // pred_check_branch
          %189 = sbr.rel (%p187) target = $region24
        $region23: #{tpu_custom_call.1} parent=11 // pred_region
          _
        $region24: #{tpu_custom_call.1} parent=11 // pred_fallthru
          _
        // Predicated region
        $region25: #{tpu_custom_call.1} parent=11 // pred_check
          %p190 = pneg %p138
        $region26: #{tpu_custom_call.1} parent=11 // pred_check_branch
          %192 = sbr.rel (%p190) target = $region28
        $region27: #{tpu_custom_call.1} parent=11 // pred_region
          _
        $region28: #{tpu_custom_call.1} parent=11 // pred_fallthru
          _
      $region12: #{tpu_custom_call.1} parent=5 // pred_fallthru
        _
      %p193 = scmp.lt.s32.totalorder %s14, 2
      // Predicated region
      $region29: #{tpu_custom_call.1} parent=5 // pred_check
        %p194 = pneg %p193
      $region30: #{tpu_custom_call.1} parent=5 // pred_check_branch
        %196 = sbr.rel (%p194) target = $region32
      $region31: #{tpu_custom_call.1} parent=5 // pred_region
        // Predicated region
        $region33: #{tpu_custom_call.1} parent=31 // pred_check
          %p197 = pneg %p48
        $region34: #{tpu_custom_call.1} parent=31 // pred_check_branch
          %199 = sbr.rel (%p197) target = $region36
        $region35: #{tpu_custom_call.1} parent=31 // pred_region
          %s200 = smul.u32 4, %s22
          %p201 = scmp.lt.s32.totalorder %s21, 1
          %s202 = scalar_select %p201, %s21, 1
          %p203 = scmp.lt.s32.totalorder %s200, 3
          %s204 = scalar_select %p203, %s200, 3
          %s205 = smul.addr %s202, 8
          %s206 = sadd.s32 %s204, %s205
          %s207 = smul.addr %s206, 8
          %s208 = scalar_lea.vmem %s0, %s207
          %s209 = smul.u32 4, %s22
        $region36: #{tpu_custom_call.1} parent=31 // pred_fallthru
          _
      $region32: #{tpu_custom_call.1} parent=5 // pred_fallthru
        _
      %p210 = scmp.le.s32.totalorder 1, %s14
      %p211 = scmp.lt.s32.totalorder %s14, 3
      %p212 = pnand %p210, %p211
      %p213 = pneg %p212
      // Predicated region
      $region37: #{tpu_custom_call.1} parent=5 // pred_check
        _
      $region38: #{tpu_custom_call.1} parent=5 // pred_check_branch
        %215 = sbr.rel (%p212) target = $region40
      $region39: #{tpu_custom_call.1} parent=5 // pred_region
        %s216 = ssub.s32 %s14, 1
        %s217 = smul.u32 4, %s24
        %p218 = scmp.lt.s32.totalorder %s23, 1
        %s219 = scalar_select %p218, %s23, 1
        %p220 = scmp.lt.s32.totalorder %s217, 3
        %s221 = scalar_select %p220, %s217, 3
        %s222 = smul.addr %s219, 8
        %s223 = sadd.s32 %s221, %s222
        %s224 = smul.addr %s223, 8
        %s225 = scalar_lea.vmem %s0, %s224
        %p226 = pneg %p54
        %p227 = pneg %p51
        %p228 = pneg %p75
        %p229 = pneg %p72
        %p230 = pneg %p96
        %p231 = pneg %p93
        %p232 = pneg %p117
        %p233 = pneg %p114
        %p234 = pneg %p138
        %p235 = pneg %p135
        %p236 = pneg %p166
        %p237 = pneg %p163
        %s238 = sand.u32 %s153, 1
        %s239 = scalar_lea.sflag [#allocation3], %s238
        %s240 = sand.u32 %s153, 1
        %s241 = smul.addr %s240, 32
        %s242 = scalar_lea.vmem [#allocation2], %s241
        %s243 = smul.u32 4, %s24
        %p244 = scmp.lt.s32.totalorder %s23, 1
        %s245 = scalar_select %p244, %s23, 1
        %p246 = scmp.lt.s32.totalorder %s243, 3
        %s247 = scalar_select %p246, %s243, 3
        %s248 = smul.addr %s245, 8
        %s249 = sadd.s32 %s247, %s248
        %s250 = smul.addr %s249, 8
        %s251 = scalar_lea.vmem %s0, %s250
        %s252 = smul.u32 4, %s24
        %v253 = vld [vmem:[%s251] sm:$0xff]
        %v254 = vld [vmem:[%s251 + $0x8] sm:$0xff]
        %v255 = vld [vmem:[%s251 + $0x10] sm:$0xff]
        %v256 = vld [vmem:[%s251 + $0x18] sm:$0xff]
        %v257 = vld [vmem:[%s251 + $0x20] sm:$0xff]
        %v258 = vld [vmem:[%s251 + $0x28] sm:$0xff]
        %v259 = vld [vmem:[%s251 + $0x30] sm:$0xff]
        %v260 = vld [vmem:[%s251 + $0x38] sm:$0xff]
        %v261 = vld [vmem:[%s2] sm:$0xff]
        %v262 = vld [vmem:[%s2 + $0x8] sm:$0xff]
        %vm263 = vcmask 130048
        %v265 = vsel %vm263, %v261, 0
        %v268 = vsel %vm263, %v262, 0
        %270 = vmatprep.subr.mxu0 0.0
        %271 = vmatpush1.msra.mxu0 0.0
        %272 = vmatprep.subr.mxu0 0.0
        %273 = vmatpush1.msra.mxu0 0.0
        %274 = vmatprep.subr.mxu0 0.0
        %275 = vmatpush1.msra.mxu0 0.0
        %276 = vmatprep.subr.mxu0 0.0
        %277 = vmatpush1.msra.mxu0 0.0
        %278 = vmatprep.subr.mxu0 0.0
        %279 = vmatpush1.msra.mxu0 0.0
        %280 = vmatprep.subr.mxu0 0.0
        %281 = vmatpush1.msra.mxu0 0.0
        %282 = vmatprep.subr.mxu0 0.0
        %283 = vmatpush1.msra.mxu0 0.0
        %284 = vmatprep.subr.mxu0 0.0
        %285 = vmatpush1.msra.mxu0 0.0
        %286 = vmatprep.subr.mxu0 0.0
        %287 = vmatpush1.msra.mxu0 0.0
        %288 = vmatprep.subr.mxu0 0.0
        %289 = vmatpush1.msra.mxu0 0.0
        %290 = vmatprep.subr.mxu0 0.0
        %291 = vmatpush1.msra.mxu0 0.0
        %292 = vmatprep.subr.mxu0 0.0
        %293 = vmatpush1.msra.mxu0 0.0
        %294 = vmatprep.subr.mxu0 0.0
        %295 = vmatpush1.msra.mxu0 0.0
        %296 = vmatprep.subr.mxu0 0.0
        %297 = vmatpush1.msra.mxu0 0.0
        %298 = vmatprep.subr.mxu0 %v258
        %299 = vmatpush1.msra.mxu0 %v257
        %300 = vmatprep.subr.mxu0 %v254
        %301 = vmatpush1.msra.mxu0 %v253
        %302 = vmatprep.subr.mxu0 0.0
        %303 = vmatpush2.msra.mxu0 0.0
        %304 = vmatprep.subr.mxu0 0.0
        %305 = vmatpush2.msra.mxu0 0.0
        %306 = vmatprep.subr.mxu0 0.0
        %307 = vmatpush2.msra.mxu0 0.0
        %308 = vmatprep.subr.mxu0 0.0
        %309 = vmatpush2.msra.mxu0 0.0
        %310 = vmatprep.subr.mxu0 0.0
        %311 = vmatpush2.msra.mxu0 0.0
        %312 = vmatprep.subr.mxu0 0.0
        %313 = vmatpush2.msra.mxu0 0.0
        %314 = vmatprep.subr.mxu0 0.0
        %315 = vmatpush2.msra.mxu0 0.0
        %316 = vmatprep.subr.mxu0 0.0
        %317 = vmatpush2.msra.mxu0 0.0
        %318 = vmatprep.subr.mxu0 0.0
        %319 = vmatpush2.msra.mxu0 0.0
        %320 = vmatprep.subr.mxu0 0.0
        %321 = vmatpush2.msra.mxu0 0.0
        %322 = vmatprep.subr.mxu0 0.0
        %323 = vmatpush2.msra.mxu0 0.0
        %324 = vmatprep.subr.mxu0 0.0
        %325 = vmatpush2.msra.mxu0 0.0
        %326 = vmatprep.subr.mxu0 0.0
        %327 = vmatpush2.msra.mxu0 0.0
        %328 = vmatprep.subr.mxu0 0.0
        %329 = vmatpush2.msra.mxu0 0.0
        %330 = vmatprep.subr.mxu0 0.0
        %331 = vmatpush2.msra.mxu0 0.0
        %332 = vmatprep.subr.mxu0 0.0
        %333 = vmatpush2.msra.mxu0 0.0
        %334 = vmatprep.mubr.f32.mxu0 0.0
        %335 = vmatmul.mubr.f32.gmra.mxu0 %v265
        %v336 = vpop.f32.mrf.mxu0
        %v337 = vadd.f32 0.0, %v336
        %v338 = vpop.f32.mrf.mxu0
        %v339 = vadd.f32 0.0, %v338
        %340 = vmatprep.mubr.f32.mxu0 0.0
        %341 = vmatmul.mubr.f32.gmra.mxu0 %v268
        %v342 = vpop.f32.mrf.mxu0
        %v343 = vadd.f32 0.0, %v342
        %v344 = vpop.f32.mrf.mxu0
        %v345 = vadd.f32 0.0, %v344
        %346 = vdwg.mxu0
        %347 = vmatprep.subr.mxu0 0.0
        %348 = vmatpush1.msra.mxu0 0.0
        %349 = vmatprep.subr.mxu0 0.0
        %350 = vmatpush1.msra.mxu0 0.0
        %351 = vmatprep.subr.mxu0 0.0
        %352 = vmatpush1.msra.mxu0 0.0
        %353 = vmatprep.subr.mxu0 0.0
        %354 = vmatpush1.msra.mxu0 0.0
        %355 = vmatprep.subr.mxu0 0.0
        %356 = vmatpush1.msra.mxu0 0.0
        %357 = vmatprep.subr.mxu0 0.0
        %358 = vmatpush1.msra.mxu0 0.0
        %359 = vmatprep.subr.mxu0 0.0
        %360 = vmatpush1.msra.mxu0 0.0
        %361 = vmatprep.subr.mxu0 0.0
        %362 = vmatpush1.msra.mxu0 0.0
        %363 = vmatprep.subr.mxu0 0.0
        %364 = vmatpush1.msra.mxu0 0.0
        %365 = vmatprep.subr.mxu0 0.0
        %366 = vmatpush1.msra.mxu0 0.0
        %367 = vmatprep.subr.mxu0 0.0
        %368 = vmatpush1.msra.mxu0 0.0
        %369 = vmatprep.subr.mxu0 0.0
        %370 = vmatpush1.msra.mxu0 0.0
        %371 = vmatprep.subr.mxu0 0.0
        %372 = vmatpush1.msra.mxu0 0.0
        %373 = vmatprep.subr.mxu0 0.0
        %374 = vmatpush1.msra.mxu0 0.0
        %375 = vmatprep.subr.mxu0 %v260
        %376 = vmatpush1.msra.mxu0 %v259
        %377 = vmatprep.subr.mxu0 %v256
        %378 = vmatpush1.msra.mxu0 %v255
        %379 = vmatprep.subr.mxu0 0.0
        %380 = vmatpush2.msra.mxu0 0.0
        %381 = vmatprep.subr.mxu0 0.0
        %382 = vmatpush2.msra.mxu0 0.0
        %383 = vmatprep.subr.mxu0 0.0
        %384 = vmatpush2.msra.mxu0 0.0
        %385 = vmatprep.subr.mxu0 0.0
        %386 = vmatpush2.msra.mxu0 0.0
        %387 = vmatprep.subr.mxu0 0.0
        %388 = vmatpush2.msra.mxu0 0.0
        %389 = vmatprep.subr.mxu0 0.0
        %390 = vmatpush2.msra.mxu0 0.0
        %391 = vmatprep.subr.mxu0 0.0
        %392 = vmatpush2.msra.mxu0 0.0
        %393 = vmatprep.subr.mxu0 0.0
        %394 = vmatpush2.msra.mxu0 0.0
        %395 = vmatprep.subr.mxu0 0.0
        %396 = vmatpush2.msra.mxu0 0.0
        %397 = vmatprep.subr.mxu0 0.0
        %398 = vmatpush2.msra.mxu0 0.0
        %399 = vmatprep.subr.mxu0 0.0
        %400 = vmatpush2.msra.mxu0 0.0
        %401 = vmatprep.subr.mxu0 0.0
        %402 = vmatpush2.msra.mxu0 0.0
        %403 = vmatprep.subr.mxu0 0.0
        %404 = vmatpush2.msra.mxu0 0.0
        %405 = vmatprep.subr.mxu0 0.0
        %406 = vmatpush2.msra.mxu0 0.0
        %407 = vmatprep.subr.mxu0 0.0
        %408 = vmatpush2.msra.mxu0 0.0
        %409 = vmatprep.subr.mxu0 0.0
        %410 = vmatpush2.msra.mxu0 0.0
        %411 = vmatprep.mubr.f32.mxu0 0.0
        %412 = vmatmul.mubr.f32.gmra.mxu0 %v265
        %v413 = vpop.f32.mrf.mxu0
        %v414 = vadd.f32 0.0, %v413
        %v415 = vpop.f32.mrf.mxu0
        %v416 = vadd.f32 0.0, %v415
        %417 = vmatprep.mubr.f32.mxu0 0.0
        %418 = vmatmul.mubr.f32.gmra.mxu0 %v268
        %v419 = vpop.f32.mrf.mxu0
        %v420 = vadd.f32 0.0, %v419
        %v421 = vpop.f32.mrf.mxu0
        %v422 = vadd.f32 0.0, %v421
        %423 = vdwg.mxu0
        %v424 = vmax.f32 %v337, %v414
        %v425 = vmax.f32 %v339, %v416
        %v426 = vmax.f32 %v424, %v425
        %427 = vmax.xlane.f32.xlu0 %v426
        %v428 = vpop.xlane.xlu0 %427
        %v429 = vmax.f32 %v343, %v420
        %v430 = vmax.f32 %v345, %v422
        %v431 = vmax.f32 %v429, %v430
        %432 = vmax.xlane.f32.xlu0 %v431
        %v433 = vpop.xlane.xlu0 %432
        %v434 = vsub.f32 %v337, %v428
        %v435 = vsub.f32 %v339, %v428
        %v436 = vsub.f32 %v414, %v428
        %v437 = vsub.f32 %v416, %v428
        %v438 = vsub.f32 %v343, %v433
        %v439 = vsub.f32 %v345, %v433
        %v440 = vsub.f32 %v420, %v433
        %v441 = vsub.f32 %v422, %v433
        %v442 = vmul.f32 %v434, 1.442695
        %v443 = vpow.pop %v442
        %v444 = vmul.f32 %v435, 1.442695
        %v445 = vpow.pop %v444
        %v446 = vmul.f32 %v436, 1.442695
        %v447 = vpow.pop %v446
        %v448 = vmul.f32 %v437, 1.442695
        %v449 = vpow.pop %v448
        %v450 = vmul.f32 %v438, 1.442695
        %v451 = vpow.pop %v450
        %v452 = vmul.f32 %v439, 1.442695
        %v453 = vpow.pop %v452
        %v454 = vmul.f32 %v440, 1.442695
        %v455 = vpow.pop %v454
        %v456 = vmul.f32 %v441, 1.442695
        %v457 = vpow.pop %v456
        %v458 = vmul.f32 %v443, %v253
        %v459 = vmul.f32 %v445, %v254
        %v460 = vmul.f32 %v447, %v255
        %v461 = vmul.f32 %v449, %v256
        %v462 = vmul.f32 %v451, %v257
        %v463 = vmul.f32 %v453, %v258
        %v464 = vmul.f32 %v455, %v259
        %v465 = vmul.f32 %v457, %v260
        %v466 = vld [vmem:[%s1] sm:$0xff]
        %v467 = vld [vmem:[%s1 + $0x8] sm:$0xff]
        %v468 = vld [vmem:[%s1 + $0x10] sm:$0xff]
        %v469 = vld [vmem:[%s1 + $0x18] sm:$0xff]
        %v470 = vld [vmem:[%s1 + $0x20] sm:$0xff]
        %v471 = vld [vmem:[%s1 + $0x28] sm:$0xff]
        %v472 = vld [vmem:[%s1 + $0x30] sm:$0xff]
        %v473 = vld [vmem:[%s1 + $0x38] sm:$0xff]
        %v474 = vld [vmem:[%s1 + $0x40] sm:$0xff]
        %v475 = vld [vmem:[%s1 + $0x48] sm:$0xff]
        %v476 = vld [vmem:[%s1 + $0x50] sm:$0xff]
        %v477 = vld [vmem:[%s1 + $0x58] sm:$0xff]
        %v478 = vld [vmem:[%s1 + $0x60] sm:$0xff]
        %v479 = vld [vmem:[%s1 + $0x68] sm:$0xff]
        %v480 = vld [vmem:[%s1 + $0x70] sm:$0xff]
        %v481 = vld [vmem:[%s1 + $0x78] sm:$0xff]
        %v482 = vld [vmem:[%s1 + $0x80] sm:$0xff]
        %v483 = vld [vmem:[%s1 + $0x88] sm:$0xff]
        %v484 = vld [vmem:[%s1 + $0x90] sm:$0xff]
        %v485 = vld [vmem:[%s1 + $0x98] sm:$0xff]
        %v486 = vld [vmem:[%s1 + $0xa0] sm:$0xff]
        %v487 = vld [vmem:[%s1 + $0xa8] sm:$0xff]
        %v488 = vld [vmem:[%s1 + $0xb0] sm:$0xff]
        %v489 = vld [vmem:[%s1 + $0xb8] sm:$0xff]
        %v490 = vld [vmem:[%s1 + $0xc0] sm:$0xff]
        %v491 = vld [vmem:[%s1 + $0xc8] sm:$0xff]
        %v492 = vld [vmem:[%s1 + $0xd0] sm:$0xff]
        %v493 = vld [vmem:[%s1 + $0xd8] sm:$0xff]
        %v494 = vld [vmem:[%s1 + $0xe0] sm:$0xff]
        %v495 = vld [vmem:[%s1 + $0xe8] sm:$0xff]
        %v496 = vld [vmem:[%s1 + $0xf0] sm:$0xff]
        %v497 = vld [vmem:[%s1 + $0xf8] sm:$0xff]
        %v498 = vld [vmem:[%s1 + $0x100] sm:$0xff]
        %v499 = vld [vmem:[%s1 + $0x108] sm:$0xff]
        %v500 = vld [vmem:[%s1 + $0x110] sm:$0xff]
        %v501 = vld [vmem:[%s1 + $0x118] sm:$0xff]
        %v502 = vld [vmem:[%s1 + $0x120] sm:$0xff]
        %v503 = vld [vmem:[%s1 + $0x128] sm:$0xff]
        %v504 = vld [vmem:[%s1 + $0x130] sm:$0xff]
        %v505 = vld [vmem:[%s1 + $0x138] sm:$0xff]
        %v506 = vld [vmem:[%s1 + $0x140] sm:$0xff]
        %v507 = vld [vmem:[%s1 + $0x148] sm:$0xff]
        %v508 = vld [vmem:[%s1 + $0x150] sm:$0xff]
        %v509 = vld [vmem:[%s1 + $0x158] sm:$0xff]
        %v510 = vld [vmem:[%s1 + $0x160] sm:$0xff]
        %v511 = vld [vmem:[%s1 + $0x168] sm:$0xff]
        %v512 = vld [vmem:[%s1 + $0x170] sm:$0xff]
        %v513 = vld [vmem:[%s1 + $0x178] sm:$0xff]
        %v514 = vld [vmem:[%s1 + $0x180] sm:$0xff]
        %v515 = vld [vmem:[%s1 + $0x188] sm:$0xff]
        %v516 = vld [vmem:[%s1 + $0x190] sm:$0xff]
        %v517 = vld [vmem:[%s1 + $0x198] sm:$0xff]
        %v518 = vld [vmem:[%s1 + $0x1a0] sm:$0xff]
        %v519 = vld [vmem:[%s1 + $0x1a8] sm:$0xff]
        %v520 = vld [vmem:[%s1 + $0x1b0] sm:$0xff]
        %v521 = vld [vmem:[%s1 + $0x1b8] sm:$0xff]
        %v522 = vld [vmem:[%s1 + $0x1c0] sm:$0xff]
        %v523 = vld [vmem:[%s1 + $0x1c8] sm:$0xff]
        %v524 = vld [vmem:[%s1 + $0x1d0] sm:$0xff]
        %v525 = vld [vmem:[%s1 + $0x1d8] sm:$0xff]
        %v526 = vld [vmem:[%s1 + $0x1e0] sm:$0xff]
        %v527 = vld [vmem:[%s1 + $0x1e8] sm:$0xff]
        %v528 = vld [vmem:[%s1 + $0x1f0] sm:$0xff]
        %v529 = vld [vmem:[%s1 + $0x1f8] sm:$0xff]
        %530 = vmatprep.subr.mxu0 0.0
        %531 = vmatpush1.msra.mxu0 %v481
        %532 = vmatprep.subr.mxu0 0.0
        %533 = vmatpush1.msra.mxu0 %v480
        %534 = vmatprep.subr.mxu0 0.0
        %535 = vmatpush1.msra.mxu0 %v479
        %536 = vmatprep.subr.mxu0 0.0
        %537 = vmatpush1.msra.mxu0 %v478
        %538 = vmatprep.subr.mxu0 0.0
        %539 = vmatpush1.msra.mxu0 %v477
        %540 = vmatprep.subr.mxu0 0.0
        %541 = vmatpush1.msra.mxu0 %v476
        %542 = vmatprep.subr.mxu0 0.0
        %543 = vmatpush1.msra.mxu0 %v475
        %544 = vmatprep.subr.mxu0 0.0
        %545 = vmatpush1.msra.mxu0 %v474
        %546 = vmatprep.subr.mxu0 0.0
        %547 = vmatpush1.msra.mxu0 %v473
        %548 = vmatprep.subr.mxu0 0.0
        %549 = vmatpush1.msra.mxu0 %v472
        %550 = vmatprep.subr.mxu0 0.0
        %551 = vmatpush1.msra.mxu0 %v471
        %552 = vmatprep.subr.mxu0 0.0
        %553 = vmatpush1.msra.mxu0 %v470
        %554 = vmatprep.subr.mxu0 0.0
        %555 = vmatpush1.msra.mxu0 %v469
        %556 = vmatprep.subr.mxu0 0.0
        %557 = vmatpush1.msra.mxu0 %v468
        %558 = vmatprep.subr.mxu0 0.0
        %559 = vmatpush1.msra.mxu0 %v467
        %560 = vmatprep.subr.mxu0 0.0
        %561 = vmatpush1.msra.mxu0 %v466
        %562 = vmatprep.subr.mxu0 0.0
        %563 = vmatpush2.msra.mxu0 %v497
        %564 = vmatprep.subr.mxu0 0.0
        %565 = vmatpush2.msra.mxu0 %v496
        %566 = vmatprep.subr.mxu0 0.0
        %567 = vmatpush2.msra.mxu0 %v495
        %568 = vmatprep.subr.mxu0 0.0
        %569 = vmatpush2.msra.mxu0 %v494
        %570 = vmatprep.subr.mxu0 0.0
        %571 = vmatpush2.msra.mxu0 %v493
        %572 = vmatprep.subr.mxu0 0.0
        %573 = vmatpush2.msra.mxu0 %v492
        %574 = vmatprep.subr.mxu0 0.0
        %575 = vmatpush2.msra.mxu0 %v491
        %576 = vmatprep.subr.mxu0 0.0
        %577 = vmatpush2.msra.mxu0 %v490
        %578 = vmatprep.subr.mxu0 0.0
        %579 = vmatpush2.msra.mxu0 %v489
        %580 = vmatprep.subr.mxu0 0.0
        %581 = vmatpush2.msra.mxu0 %v488
        %582 = vmatprep.subr.mxu0 0.0
        %583 = vmatpush2.msra.mxu0 %v487
        %584 = vmatprep.subr.mxu0 0.0
        %585 = vmatpush2.msra.mxu0 %v486
        %586 = vmatprep.subr.mxu0 0.0
        %587 = vmatpush2.msra.mxu0 %v485
        %588 = vmatprep.subr.mxu0 0.0
        %589 = vmatpush2.msra.mxu0 %v484
        %590 = vmatprep.subr.mxu0 0.0
        %591 = vmatpush2.msra.mxu0 %v483
        %592 = vmatprep.subr.mxu0 0.0
        %593 = vmatpush2.msra.mxu0 %v482
        %594 = vmatprep.mubr.f32.mxu0 %v445
        %595 = vmatmul.mubr.f32.gmra.mxu0 %v443
        %v596 = vpop.f32.mrf.mxu0
        %v597 = vadd.f32 0.0, %v596
        %v598 = vpop.f32.mrf.mxu0
        %599 = vmatprep.mubr.f32.mxu0 %v453
        %600 = vmatmul.mubr.f32.gmra.mxu0 %v451
        %v601 = vpop.f32.mrf.mxu0
        %v602 = vadd.f32 0.0, %v601
        %v603 = vpop.f32.mrf.mxu0
        %604 = vdwg.mxu0
        %605 = vmatprep.subr.mxu0 0.0
        %606 = vmatpush1.msra.mxu0 %v513
        %607 = vmatprep.subr.mxu0 0.0
        %608 = vmatpush1.msra.mxu0 %v512
        %609 = vmatprep.subr.mxu0 0.0
        %610 = vmatpush1.msra.mxu0 %v511
        %611 = vmatprep.subr.mxu0 0.0
        %612 = vmatpush1.msra.mxu0 %v510
        %613 = vmatprep.subr.mxu0 0.0
        %614 = vmatpush1.msra.mxu0 %v509
        %615 = vmatprep.subr.mxu0 0.0
        %616 = vmatpush1.msra.mxu0 %v508
        %617 = vmatprep.subr.mxu0 0.0
        %618 = vmatpush1.msra.mxu0 %v507
        %619 = vmatprep.subr.mxu0 0.0
        %620 = vmatpush1.msra.mxu0 %v506
        %621 = vmatprep.subr.mxu0 0.0
        %622 = vmatpush1.msra.mxu0 %v505
        %623 = vmatprep.subr.mxu0 0.0
        %624 = vmatpush1.msra.mxu0 %v504
        %625 = vmatprep.subr.mxu0 0.0
        %626 = vmatpush1.msra.mxu0 %v503
        %627 = vmatprep.subr.mxu0 0.0
        %628 = vmatpush1.msra.mxu0 %v502
        %629 = vmatprep.subr.mxu0 0.0
        %630 = vmatpush1.msra.mxu0 %v501
        %631 = vmatprep.subr.mxu0 0.0
        %632 = vmatpush1.msra.mxu0 %v500
        %633 = vmatprep.subr.mxu0 0.0
        %634 = vmatpush1.msra.mxu0 %v499
        %635 = vmatprep.subr.mxu0 0.0
        %636 = vmatpush1.msra.mxu0 %v498
        %637 = vmatprep.subr.mxu0 0.0
        %638 = vmatpush2.msra.mxu0 %v529
        %639 = vmatprep.subr.mxu0 0.0
        %640 = vmatpush2.msra.mxu0 %v528
        %641 = vmatprep.subr.mxu0 0.0
        %642 = vmatpush2.msra.mxu0 %v527
        %643 = vmatprep.subr.mxu0 0.0
        %644 = vmatpush2.msra.mxu0 %v526
        %645 = vmatprep.subr.mxu0 0.0
        %646 = vmatpush2.msra.mxu0 %v525
        %647 = vmatprep.subr.mxu0 0.0
        %648 = vmatpush2.msra.mxu0 %v524
        %649 = vmatprep.subr.mxu0 0.0
        %650 = vmatpush2.msra.mxu0 %v523
        %651 = vmatprep.subr.mxu0 0.0
        %652 = vmatpush2.msra.mxu0 %v522
        %653 = vmatprep.subr.mxu0 0.0
        %654 = vmatpush2.msra.mxu0 %v521
        %655 = vmatprep.subr.mxu0 0.0
        %656 = vmatpush2.msra.mxu0 %v520
        %657 = vmatprep.subr.mxu0 0.0
        %658 = vmatpush2.msra.mxu0 %v519
        %659 = vmatprep.subr.mxu0 0.0
        %660 = vmatpush2.msra.mxu0 %v518
        %661 = vmatprep.subr.mxu0 0.0
        %662 = vmatpush2.msra.mxu0 %v517
        %663 = vmatprep.subr.mxu0 0.0
        %664 = vmatpush2.msra.mxu0 %v516
        %665 = vmatprep.subr.mxu0 0.0
        %666 = vmatpush2.msra.mxu0 %v515
        %667 = vmatprep.subr.mxu0 0.0
        %668 = vmatpush2.msra.mxu0 %v514
        %669 = vmatprep.mubr.f32.mxu0 %v449
        %670 = vmatmul.mubr.f32.gmra.mxu0 %v447
        %v671 = vpop.f32.mrf.mxu0
        %v672 = vadd.f32 %v597, %v671
        %v673 = vpop.f32.mrf.mxu0
        %674 = vmatprep.mubr.f32.mxu0 %v457
        %675 = vmatmul.mubr.f32.gmra.mxu0 %v455
        %v676 = vpop.f32.mrf.mxu0
        %v677 = vadd.f32 %v602, %v676
        %v678 = vpop.f32.mrf.mxu0
        %679 = vdwg.mxu0
        %680 = vmatprep.subr.mxu0 0.0
        %681 = vmatpush1.msra.mxu0 %v481
        %682 = vmatprep.subr.mxu0 0.0
        %683 = vmatpush1.msra.mxu0 %v480
        %684 = vmatprep.subr.mxu0 0.0
        %685 = vmatpush1.msra.mxu0 %v479
        %686 = vmatprep.subr.mxu0 0.0
        %687 = vmatpush1.msra.mxu0 %v478
        %688 = vmatprep.subr.mxu0 0.0
        %689 = vmatpush1.msra.mxu0 %v477
        %690 = vmatprep.subr.mxu0 0.0
        %691 = vmatpush1.msra.mxu0 %v476
        %692 = vmatprep.subr.mxu0 0.0
        %693 = vmatpush1.msra.mxu0 %v475
        %694 = vmatprep.subr.mxu0 0.0
        %695 = vmatpush1.msra.mxu0 %v474
        %696 = vmatprep.subr.mxu0 0.0
        %697 = vmatpush1.msra.mxu0 %v473
        %698 = vmatprep.subr.mxu0 0.0
        %699 = vmatpush1.msra.mxu0 %v472
        %700 = vmatprep.subr.mxu0 0.0
        %701 = vmatpush1.msra.mxu0 %v471
        %702 = vmatprep.subr.mxu0 0.0
        %703 = vmatpush1.msra.mxu0 %v470
        %704 = vmatprep.subr.mxu0 0.0
        %705 = vmatpush1.msra.mxu0 %v469
        %706 = vmatprep.subr.mxu0 0.0
        %707 = vmatpush1.msra.mxu0 %v468
        %708 = vmatprep.subr.mxu0 0.0
        %709 = vmatpush1.msra.mxu0 %v467
        %710 = vmatprep.subr.mxu0 0.0
        %711 = vmatpush1.msra.mxu0 %v466
        %712 = vmatprep.subr.mxu0 0.0
        %713 = vmatpush2.msra.mxu0 %v497
        %714 = vmatprep.subr.mxu0 0.0
        %715 = vmatpush2.msra.mxu0 %v496
        %716 = vmatprep.subr.mxu0 0.0
        %717 = vmatpush2.msra.mxu0 %v495
        %718 = vmatprep.subr.mxu0 0.0
        %719 = vmatpush2.msra.mxu0 %v494
        %720 = vmatprep.subr.mxu0 0.0
        %721 = vmatpush2.msra.mxu0 %v493
        %722 = vmatprep.subr.mxu0 0.0
        %723 = vmatpush2.msra.mxu0 %v492
        %724 = vmatprep.subr.mxu0 0.0
        %725 = vmatpush2.msra.mxu0 %v491
        %726 = vmatprep.subr.mxu0 0.0
        %727 = vmatpush2.msra.mxu0 %v490
        %728 = vmatprep.subr.mxu0 0.0
        %729 = vmatpush2.msra.mxu0 %v489
        %730 = vmatprep.subr.mxu0 0.0
        %731 = vmatpush2.msra.mxu0 %v488
        %732 = vmatprep.subr.mxu0 0.0
        %733 = vmatpush2.msra.mxu0 %v487
        %734 = vmatprep.subr.mxu0 0.0
        %735 = vmatpush2.msra.mxu0 %v486
        %736 = vmatprep.subr.mxu0 0.0
        %737 = vmatpush2.msra.mxu0 %v485
        %738 = vmatprep.subr.mxu0 0.0
        %739 = vmatpush2.msra.mxu0 %v484
        %740 = vmatprep.subr.mxu0 0.0
        %741 = vmatpush2.msra.mxu0 %v483
        %742 = vmatprep.subr.mxu0 0.0
        %743 = vmatpush2.msra.mxu0 %v482
        %744 = vmatprep.mubr.f32.mxu0 %v459
        %745 = vmatmul.mubr.f32.gmra.mxu0 %v458
        %v746 = vpop.f32.mrf.mxu0
        %v747 = vadd.f32 0.0, %v746
        %v748 = vpop.f32.mrf.mxu0
        %749 = vmatprep.mubr.f32.mxu0 %v463
        %750 = vmatmul.mubr.f32.gmra.mxu0 %v462
        %v751 = vpop.f32.mrf.mxu0
        %v752 = vadd.f32 0.0, %v751
        %v753 = vpop.f32.mrf.mxu0
        %754 = vdwg.mxu0
        %755 = vmatprep.subr.mxu0 0.0
        %756 = vmatpush1.msra.mxu0 %v513
        %757 = vmatprep.subr.mxu0 0.0
        %758 = vmatpush1.msra.mxu0 %v512
        %759 = vmatprep.subr.mxu0 0.0
        %760 = vmatpush1.msra.mxu0 %v511
        %761 = vmatprep.subr.mxu0 0.0
        %762 = vmatpush1.msra.mxu0 %v510
        %763 = vmatprep.subr.mxu0 0.0
        %764 = vmatpush1.msra.mxu0 %v509
        %765 = vmatprep.subr.mxu0 0.0
        %766 = vmatpush1.msra.mxu0 %v508
        %767 = vmatprep.subr.mxu0 0.0
        %768 = vmatpush1.msra.mxu0 %v507
        %769 = vmatprep.subr.mxu0 0.0
        %770 = vmatpush1.msra.mxu0 %v506
        %771 = vmatprep.subr.mxu0 0.0
        %772 = vmatpush1.msra.mxu0 %v505
        %773 = vmatprep.subr.mxu0 0.0
        %774 = vmatpush1.msra.mxu0 %v504
        %775 = vmatprep.subr.mxu0 0.0
        %776 = vmatpush1.msra.mxu0 %v503
        %777 = vmatprep.subr.mxu0 0.0
        %778 = vmatpush1.msra.mxu0 %v502
        %779 = vmatprep.subr.mxu0 0.0
        %780 = vmatpush1.msra.mxu0 %v501
        %781 = vmatprep.subr.mxu0 0.0
        %782 = vmatpush1.msra.mxu0 %v500
        %783 = vmatprep.subr.mxu0 0.0
        %784 = vmatpush1.msra.mxu0 %v499
        %785 = vmatprep.subr.mxu0 0.0
        %786 = vmatpush1.msra.mxu0 %v498
        %787 = vmatprep.subr.mxu0 0.0
        %788 = vmatpush2.msra.mxu0 %v529
        %789 = vmatprep.subr.mxu0 0.0
        %790 = vmatpush2.msra.mxu0 %v528
        %791 = vmatprep.subr.mxu0 0.0
        %792 = vmatpush2.msra.mxu0 %v527
        %793 = vmatprep.subr.mxu0 0.0
        %794 = vmatpush2.msra.mxu0 %v526
        %795 = vmatprep.subr.mxu0 0.0
        %796 = vmatpush2.msra.mxu0 %v525
        %797 = vmatprep.subr.mxu0 0.0
        %798 = vmatpush2.msra.mxu0 %v524
        %799 = vmatprep.subr.mxu0 0.0
        %800 = vmatpush2.msra.mxu0 %v523
        %801 = vmatprep.subr.mxu0 0.0
        %802 = vmatpush2.msra.mxu0 %v522
        %803 = vmatprep.subr.mxu0 0.0
        %804 = vmatpush2.msra.mxu0 %v521
        %805 = vmatprep.subr.mxu0 0.0
        %806 = vmatpush2.msra.mxu0 %v520
        %807 = vmatprep.subr.mxu0 0.0
        %808 = vmatpush2.msra.mxu0 %v519
        %809 = vmatprep.subr.mxu0 0.0
        %810 = vmatpush2.msra.mxu0 %v518
        %811 = vmatprep.subr.mxu0 0.0
        %812 = vmatpush2.msra.mxu0 %v517
        %813 = vmatprep.subr.mxu0 0.0
        %814 = vmatpush2.msra.mxu0 %v516
        %815 = vmatprep.subr.mxu0 0.0
        %816 = vmatpush2.msra.mxu0 %v515
        %817 = vmatprep.subr.mxu0 0.0
        %818 = vmatpush2.msra.mxu0 %v514
        %819 = vmatprep.mubr.f32.mxu0 %v461
        %820 = vmatmul.mubr.f32.gmra.mxu0 %v460
        %v821 = vpop.f32.mrf.mxu0
        %v822 = vadd.f32 %v747, %v821
        %v823 = vpop.f32.mrf.mxu0
        %824 = vmatprep.mubr.f32.mxu0 %v465
        %825 = vmatmul.mubr.f32.gmra.mxu0 %v464
        %v826 = vpop.f32.mrf.mxu0
        %v827 = vadd.f32 %v752, %v826
        %v828 = vpop.f32.mrf.mxu0
        %829 = vdwg.mxu0
        %v830 = vmax.f32 %v672, 1e-30
        %v831 = vmax.f32 %v677, 1e-30
        %v832 = vrcp.pop %v830
        %v833 = vrcp.pop %v831
        %v834 = vmul.f32 %v822, %v832
        %v835 = vmul.f32 %v827, %v833
        %v836 = vld [vmem:[%s3] sm:$0xff]
        %v837 = vld [vmem:[%s3 + $0x8] sm:$0xff]
        %v838 = vld [vmem:[%s3 + $0x10] sm:$0xff]
        %v839 = vld [vmem:[%s3 + $0x18] sm:$0xff]
        %v840 = vld [vmem:[%s4] sm:$0xff]
        %v841 = vld [vmem:[%s4 + $0x8] sm:$0xff]
        %v842 = vld [vmem:[%s4 + $0x10] sm:$0xff]
        %v843 = vld [vmem:[%s4 + $0x18] sm:$0xff]
        %845 = vset.pattern.permute.xlu0 0
        %846 = vperm.xlu0 %845, %v840
        %v847 = vpop.permute.xlu0 %846
        %850 = vset.pattern.permute.xlu0 0
        %851 = vperm.xlu0 %850, %v841
        %v852 = vpop.permute.xlu0 %851
        %855 = vset.pattern.permute.xlu0 0
        %856 = vperm.xlu0 %855, %v842
        %v857 = vpop.permute.xlu0 %856
        %860 = vset.pattern.permute.xlu0 0
        %861 = vperm.xlu0 %860, %v843
        %v862 = vpop.permute.xlu0 %861
        %v865 = vsel %vm263, %v836, 0
        %v868 = vsel %vm263, %v837, 0
        %v871 = vsel %vm263, %v838, 0
        %v874 = vsel %vm263, %v839, 0
        %876 = vmatprep.subr.mxu0 0.0
        %877 = vmatpush1.msra.mxu0 0.0
        %878 = vmatprep.subr.mxu0 0.0
        %879 = vmatpush1.msra.mxu0 0.0
        %880 = vmatprep.subr.mxu0 0.0
        %881 = vmatpush1.msra.mxu0 0.0
        %882 = vmatprep.subr.mxu0 0.0
        %883 = vmatpush1.msra.mxu0 0.0
        %884 = vmatprep.subr.mxu0 0.0
        %885 = vmatpush1.msra.mxu0 0.0
        %886 = vmatprep.subr.mxu0 0.0
        %887 = vmatpush1.msra.mxu0 0.0
        %888 = vmatprep.subr.mxu0 0.0
        %889 = vmatpush1.msra.mxu0 0.0
        %890 = vmatprep.subr.mxu0 0.0
        %891 = vmatpush1.msra.mxu0 0.0
        %892 = vmatprep.subr.mxu0 0.0
        %893 = vmatpush1.msra.mxu0 0.0
        %894 = vmatprep.subr.mxu0 0.0
        %895 = vmatpush1.msra.mxu0 0.0
        %896 = vmatprep.subr.mxu0 0.0
        %897 = vmatpush1.msra.mxu0 0.0
        %898 = vmatprep.subr.mxu0 0.0
        %899 = vmatpush1.msra.mxu0 0.0
        %900 = vmatprep.subr.mxu0 0.0
        %901 = vmatpush1.msra.mxu0 0.0
        %902 = vmatprep.subr.mxu0 0.0
        %903 = vmatpush1.msra.mxu0 0.0
        %904 = vmatprep.subr.mxu0 0.0
        %905 = vmatpush1.msra.mxu0 %v835
        %906 = vmatprep.subr.mxu0 0.0
        %907 = vmatpush1.msra.mxu0 %v834
        %908 = vmatprep.subr.mxu0 0.0
        %909 = vmatpush2.msra.mxu0 0.0
        %910 = vmatprep.subr.mxu0 0.0
        %911 = vmatpush2.msra.mxu0 0.0
        %912 = vmatprep.subr.mxu0 0.0
        %913 = vmatpush2.msra.mxu0 0.0
        %914 = vmatprep.subr.mxu0 0.0
        %915 = vmatpush2.msra.mxu0 0.0
        %916 = vmatprep.subr.mxu0 0.0
        %917 = vmatpush2.msra.mxu0 0.0
        %918 = vmatprep.subr.mxu0 0.0
        %919 = vmatpush2.msra.mxu0 0.0
        %920 = vmatprep.subr.mxu0 0.0
        %921 = vmatpush2.msra.mxu0 0.0
        %922 = vmatprep.subr.mxu0 0.0
        %923 = vmatpush2.msra.mxu0 0.0
        %924 = vmatprep.subr.mxu0 0.0
        %925 = vmatpush2.msra.mxu0 0.0
        %926 = vmatprep.subr.mxu0 0.0
        %927 = vmatpush2.msra.mxu0 0.0
        %928 = vmatprep.subr.mxu0 0.0
        %929 = vmatpush2.msra.mxu0 0.0
        %930 = vmatprep.subr.mxu0 0.0
        %931 = vmatpush2.msra.mxu0 0.0
        %932 = vmatprep.subr.mxu0 0.0
        %933 = vmatpush2.msra.mxu0 0.0
        %934 = vmatprep.subr.mxu0 0.0
        %935 = vmatpush2.msra.mxu0 0.0
        %936 = vmatprep.subr.mxu0 0.0
        %937 = vmatpush2.msra.mxu0 0.0
        %938 = vmatprep.subr.mxu0 0.0
        %939 = vmatpush2.msra.mxu0 0.0
        %940 = vmatprep.mubr.f32.mxu0 0.0
        %941 = vmatmul.mubr.f32.gmra.mxu0 %v865
        %v942 = vpop.f32.mrf.mxu0
        %v943 = vadd.f32 %v847, %v942
        %v944 = vpop.f32.mrf.mxu0
        %945 = vmatprep.mubr.f32.mxu0 0.0
        %946 = vmatmul.mubr.f32.gmra.mxu0 %v868
        %v947 = vpop.f32.mrf.mxu0
        %v948 = vadd.f32 %v852, %v947
        %v949 = vpop.f32.mrf.mxu0
        %950 = vmatprep.mubr.f32.mxu0 0.0
        %951 = vmatmul.mubr.f32.gmra.mxu0 %v871
        %v952 = vpop.f32.mrf.mxu0
        %v953 = vadd.f32 %v857, %v952
        %v954 = vpop.f32.mrf.mxu0
        %955 = vmatprep.mubr.f32.mxu0 0.0
        %956 = vmatmul.mubr.f32.gmra.mxu0 %v874
        %v957 = vpop.f32.mrf.mxu0
        %v958 = vadd.f32 %v862, %v957
        %v959 = vpop.f32.mrf.mxu0
        %960 = vdwg.mxu0
        %v961 = vmax.f32 %v943, 0.0
        %v962 = vmax.f32 %v948, 0.0
        %v963 = vmax.f32 %v953, 0.0
        %v964 = vmax.f32 %v958, 0.0
        %vm965 = vcmask 523264
        %966 = vst.msk [vmem:[%s242] sm:$0xff] %vm965, %v961
        %967 = vst.msk [vmem:[%s242 + $0x8] sm:$0xff] %vm965, %v962
        %968 = vst.msk [vmem:[%s242 + $0x10] sm:$0xff] %vm965, %v963
        %969 = vst.msk [vmem:[%s242 + $0x18] sm:$0xff] %vm965, %v964
        %s970 = sand.u32 %s153, 1
        %s971 = scalar_lea.sflag [#allocation3], %s970
        %s972 = sand.u32 %s153, 1
        %s973 = smul.addr %s972, 32
        %s974 = scalar_lea.vmem [#allocation2], %s973
        // Predicated region
        $region41: #{tpu_custom_call.1} parent=39 // pred_check
          %p975 = pneg %p163
        $region42: #{tpu_custom_call.1} parent=39 // pred_check_branch
          %977 = sbr.rel (%p975) target = $region44
        $region43: #{tpu_custom_call.1} parent=39 // pred_region
          %s979 = ssub.s32 512, 512
          %980 = vsyncadd %s971, %s979
          %s981 = smul.addr %s23, 4
          %s982 = sadd.s32 %s24, %s981
          %s983 = smul.addr %s982, 128
          %s984 = scalar_lea.hbm %s5, %s983
          %s985 = sshll.u32 %s974, 4
          %s986 = int_to_ptr.vmem [resolvable:$true] %s985
          %991 = dma.vmem_to_hbm [thread:$0]  %s986, 512, %s984, %s971, 128, 128, 8
        $region44: #{tpu_custom_call.1} parent=39 // pred_fallthru
          _
      $region40: #{tpu_custom_call.1} parent=5 // pred_fallthru
        _
      %p992 = scmp.le.s32.totalorder 2, %s14
      // Predicated region
      $region45: #{tpu_custom_call.1} parent=5 // pred_check
        %p993 = pneg %p992
      $region46: #{tpu_custom_call.1} parent=5 // pred_check_branch
        %995 = sbr.rel (%p993) target = $region48
      $region47: #{tpu_custom_call.1} parent=5 // pred_region
        %s996 = ssub.s32 %s14, 2
        // Predicated region
        $region49: #{tpu_custom_call.1} parent=47 // pred_check
          %p997 = pneg %p169
        $region50: #{tpu_custom_call.1} parent=47 // pred_check_branch
          %999 = sbr.rel (%p997) target = $region52
        $region51: #{tpu_custom_call.1} parent=47 // pred_region
          %s1000 = sand.u32 %s154, 1
          %s1001 = scalar_lea.sflag [#allocation3], %s1000
          %s1002 = sand.u32 %s154, 1
          %s1003 = smul.addr %s1002, 32
          %s1004 = scalar_lea.vmem [#allocation2], %s1003
          %1005 = dma.done %s1001, 512
        $region52: #{tpu_custom_call.1} parent=47 // pred_fallthru
          _
      $region48: #{tpu_custom_call.1} parent=5 // pred_fallthru
        _
    $region6: #{tpu_custom_call.1} parent=1 // loop_footer
      %s18 = sadd.s32 1, %s14
    $region7: #{tpu_custom_call.1} parent=1 // loop_footer_branch
      %13 = sbr.rel target = $region3
    $region8: #{tpu_custom_call.1} parent=1 // loop_exit
      _
    %1006 = vsyncpa [#allocation3], 1
    %s1007 = scalar_lea.sflag [#allocation3], 1
    %1008 = vsyncpa %s1007, 1

</llo_original>
